<compile_context>
chip_gen: v5e
topology: v5e:2x2
jax: 0.10.0
libtpu: 0.0.40
codegen_flags: <defaults>
</compile_context>

<pallas_src>
import functools

import jax
import jax.numpy as jnp
from jax import lax
from jax.experimental import pallas as pl
from jax.experimental.pallas import tpu as pltpu

IN_DIM = 8
HID = 90
HID_PAD = 128        # hidden width padded to a full lane tile
OUT_DIM = 1

_BLOCK_CAP = 4096    # max batch rows per grid step (VMEM cost ~2 MB/intermediate)
_MIN_SPLIT = 512     # below this, splitting across 2 TCs isn't worth the overhead
_TINY_BATCH = 256    # below this, plain XLA beats kernel-launch overhead


def _round_up(x, m):
    return ((x + m - 1) // m) * m


def _num_tensorcores():
    """Best-effort TensorCores-per-device count (2 on v7x, 1 on v5e/v6e).

    Falls back to 2 so tiling stays v7x-friendly if detection fails; on a
    single-TC chip the only cost is one extra ~0.35us grid step.
    """
    try:
        dev = jax.devices()[0]
        for attr in ("num_cores", "core_count", "num_tensorcores"):
            v = getattr(dev, attr, None)
            if isinstance(v, int) and 1 <= v <= 8:
                return v
    except Exception:
        pass
    return 2


# ----------------------------------------------------------------------------
# Kernel
# ----------------------------------------------------------------------------
def _mlp_kernel(x_ref, w1_ref, b1_ref, w2_ref, b2_ref, w3_ref, b3_ref,
                w4_ref, b4_ref, o_ref):
    """Whole 4-layer MLP forward for one batch tile, entirely in VMEM.

    Weights are bf16 and zero-padded to HID_PAD lanes (padded activation
    columns stay exactly zero through every ReLU).  Matmuls run bf16 x bf16
    with f32 accumulation on the MXU; bias-add / ReLU stay in f32 (VPU).
    """
    # Layer 1: K=8 (intentionally NOT padded to 128 -- see header note).
    x = x_ref[...].astype(jnp.bfloat16)                                 # (bb, 8)
    h = jnp.dot(x, w1_ref[...], preferred_element_type=jnp.float32) + b1_ref[...]
    h = jnp.maximum(h, 0.0)

    h = jnp.dot(h.astype(jnp.bfloat16), w2_ref[...],
                preferred_element_type=jnp.float32) + b2_ref[...]
    h = jnp.maximum(h, 0.0)

    h = jnp.dot(h.astype(jnp.bfloat16), w3_ref[...],
                preferred_element_type=jnp.float32) + b3_ref[...]
    h = jnp.maximum(h, 0.0)

    # Final layer (out_features == 1): contract the (1, HID_PAD) weight row
    # against the activations' feature dim so the result is a lane-dense
    # (1, block_b) slab instead of a masked (block_b, 1) column.
    o = lax.dot_general(w4_ref[...], h.astype(jnp.bfloat16),
                        (((1,), (1,)), ((), ())),
                        preferred_element_type=jnp.float32)             # (1, bb)
    o_ref[...] = (o + b4_ref[...]).astype(o_ref.dtype)


# ----------------------------------------------------------------------------
# Wrappers
# ----------------------------------------------------------------------------
def prepare_params(params):
    """One-time parameter prep (hoisted out of the per-call hot path).

    Pads the hidden width 90 -> 128 with zeros (math-preserving through ReLU),
    transposes the last layer to a (1, HID_PAD) row vector, casts weight
    matrices to bf16 for the MXU, and keeps biases in f32.
    """
    w1, b1, w2, b2, w3, b3, w4, b4 = params
    ph = HID_PAD - HID
    w1p = jnp.pad(w1, ((0, 0), (0, ph))).astype(jnp.bfloat16)   # (8, 128)
    b1p = jnp.pad(b1, ((0, 0), (0, ph))).astype(jnp.float32)    # (1, 128)
    w2p = jnp.pad(w2, ((0, ph), (0, ph))).astype(jnp.bfloat16)  # (128, 128)
    b2p = jnp.pad(b2, ((0, 0), (0, ph))).astype(jnp.float32)
    w3p = jnp.pad(w3, ((0, ph), (0, ph))).astype(jnp.bfloat16)
    b3p = jnp.pad(b3, ((0, 0), (0, ph))).astype(jnp.float32)
    w4p = jnp.pad(w4, ((0, ph), (0, 0))).T.astype(jnp.bfloat16)  # (1, 128)
    b4p = b4.reshape(1, OUT_DIM).astype(jnp.float32)             # (1, 1)
    return (w1p, b1p, w2p, b2p, w3p, b3p, w4p, b4p)


@functools.partial(jax.jit, static_argnames=("block_b",))
def _nn_forward_pallas(x, prepared, block_b):
    B = x.shape[0]
    w1p, b1p, w2p, b2p, w3p, b3p, w4p, b4p = prepared

    # Pad the batch to a multiple of the tile; extra rows are dropped at the end.
    b_pad = _round_up(B, block_b)
    xp = jnp.pad(x, ((0, b_pad - B), (0, 0))) if b_pad != B else x
    num_tiles = b_pad // block_b

    def const_spec(shape):
        # Grid-invariant: fetched once, resident in VMEM for the whole grid.
        return pl.BlockSpec(shape, lambda i: (0,) * len(shape))

    flops = 2 * b_pad * (IN_DIM * HID_PAD + 2 * HID_PAD * HID_PAD + HID_PAD)
    bytes_accessed = (
        4 * xp.size + 4 * b_pad
        + 2 * (w1p.size + w2p.size + w3p.size + w4p.size)
        + 4 * (b1p.size + b2p.size + b3p.size + b4p.size))

    out = pl.pallas_call(
        _mlp_kernel,
        out_shape=jax.ShapeDtypeStruct((1, b_pad), jnp.float32),
        grid_spec=pltpu.PrefetchScalarGridSpec(
            num_scalar_prefetch=0,
            grid=(num_tiles,),
            in_specs=[
                pl.BlockSpec((block_b, IN_DIM), lambda i: (i, 0)),   # x tile
                const_spec(w1p.shape), const_spec(b1p.shape),
                const_spec(w2p.shape), const_spec(b2p.shape),
                const_spec(w3p.shape), const_spec(b3p.shape),
                const_spec(w4p.shape), const_spec(b4p.shape),
            ],
            out_specs=pl.BlockSpec((1, block_b), lambda i: (0, i)),  # lane-dense slab
        ),
        compiler_params=pltpu.CompilerParams(
            dimension_semantics=("parallel",)),
        cost_estimate=pl.CostEstimate(
            flops=flops, transcendentals=0, bytes_accessed=bytes_accessed),
    )(xp, w1p, b1p, w2p, b2p, w3p, b3p, w4p, b4p)

    return out.reshape(b_pad, OUT_DIM)[:B]


@jax.jit
def _nn_forward_xla(x, prepared):
    """Fused XLA path for tiny batches (same bf16-matmul / f32-accum math)."""
    w1p, b1p, w2p, b2p, w3p, b3p, w4p, b4p = prepared
    h = jnp.maximum(jnp.dot(x.astype(jnp.bfloat16), w1p,
                            preferred_element_type=jnp.float32) + b1p, 0.0)
    h = jnp.maximum(jnp.dot(h.astype(jnp.bfloat16), w2p,
                            preferred_element_type=jnp.float32) + b2p, 0.0)
    h = jnp.maximum(jnp.dot(h.astype(jnp.bfloat16), w3p,
                            preferred_element_type=jnp.float32) + b3p, 0.0)
    return jnp.dot(h.astype(jnp.bfloat16), w4p.T,
                   preferred_element_type=jnp.float32) + b4p


def _choose_block_b(batch):
    """Batch-tile size: big enough to amortize the ~0.35us/step overhead and
    (on 2-TC chips) shaped so the parallel grid axis splits evenly."""
    b_pad = _round_up(max(batch, 1), 128)
    if _num_tensorcores() <= 1:
        # v5e / v6e: single max-size tile whenever it fits the cap.
        return int(min(b_pad, _BLOCK_CAP))
    # v7x (2 TCs): force an even number of tiles unless the batch is tiny.
    if b_pad < _MIN_SPLIT:
        return int(b_pad)
    n_tiles = max(2, pl.cdiv(b_pad, _BLOCK_CAP))
    n_tiles += n_tiles % 2                      # even tile count
    return int(min(_BLOCK_CAP, _round_up(pl.cdiv(b_pad, n_tiles), 128)))


def nn_forward(x, prepared_params, *, block_b=None, use_pallas=None):
    """Forward pass of NN: Linear(8,90)->ReLU x3 -> Linear(90,1).

    `prepared_params` must come from prepare_params(raw_params).
    `use_pallas=None` auto-dispatches: tiny batches use the fused XLA path.
    """
    prepared = tuple(prepared_params)
    B = x.shape[0]
    if use_pallas is None:
        use_pallas = B >= _TINY_BATCH
    if not use_pallas:
        return _nn_forward_xla(x, prepared)
    if block_b is None:
        block_b = _choose_block_b(B)
    return _nn_forward_pallas(x, prepared, block_b)


# ----------------------------------------------------------------------------
# Parameter init & reference (for the self-test)
# ----------------------------------------------------------------------------
def init_params(key):
    """Deterministic init mimicking PyTorch nn.Linear defaults.

    Weights are stored pre-transposed as (in_features, out_features) so the
    math is x @ W + b (== PyTorch's x @ W.T + b). Biases are (1, out).
    """
    dims = [(IN_DIM, HID), (HID, HID), (HID, HID), (HID, OUT_DIM)]
    params = []
    for fan_in, fan_out in dims:
        key, kw, kb = jax.random.split(key, 3)
        bound = 1.0 / jnp.sqrt(jnp.float32(fan_in))
        w = jax.random.uniform(kw, (fan_in, fan_out), jnp.float32, -bound, bound)
        b = jax.random.uniform(kb, (1, fan_out), jnp.float32, -bound, bound)
        params.extend([w, b])
    return tuple(params)


def reference_forward(x, params):
    """Pure f32 reference (matches the PyTorch module's math)."""
    w1, b1, w2, b2, w3, b3, w4, b4 = params
    h = jnp.maximum(x @ w1 + b1, 0.0)
    h = jnp.maximum(h @ w2 + b2, 0.0)
    h = jnp.maximum(h @ w3 + b3, 0.0)
    return h @ w4 + b4


# TODO(synk): train/fit/predict (Adam + MSE training loop, DataLoader plumbing)
# are host-side training utilities with no Pallas equivalent; only forward() is
# implemented as a kernel.

if __name__ == "__main__":
    key = jax.random.PRNGKey(0)
    key, kx = jax.random.split(key)
    raw_params = init_params(key)
    prepared = prepare_params(raw_params)   # pad/cast hoisted out of the hot path

    # Small batch (module's demo scale) exercising the Pallas path explicitly,
    # plus a larger non-multiple batch exercising padding + multi-tile grid.
    for B, force in ((16, True), (1000, None)):
        x = jax.random.normal(jax.random.fold_in(kx, B), (B, IN_DIM), jnp.float32)
        out = jax.block_until_ready(nn_forward(x, prepared, use_pallas=force))
        ref = reference_forward(x, raw_params)
        assert out.shape == (B, OUT_DIM)
        # bf16 matmul operands => loosen tolerance vs the f32 reference.
        max_err = float(jnp.max(jnp.abs(out - ref)))
        assert max_err < 5e-2, ("max abs err", max_err)

    print("KERNEL_OK")
</pallas_src>

<mosaic_0001>
module attributes {stable_mosaic.version = 11 : i64} {
  func.func @_mlp_kernel(%arg0: i32, %arg1: memref<128x8xf32, #tpu.memory_space<vmem>>, %arg2: memref<8x128xbf16, #tpu.memory_space<vmem>>, %arg3: memref<1x128xf32, #tpu.memory_space<vmem>>, %arg4: memref<128x128xbf16, #tpu.memory_space<vmem>>, %arg5: memref<1x128xf32, #tpu.memory_space<vmem>>, %arg6: memref<128x128xbf16, #tpu.memory_space<vmem>>, %arg7: memref<1x128xf32, #tpu.memory_space<vmem>>, %arg8: memref<1x128xbf16, #tpu.memory_space<vmem>>, %arg9: memref<1x1xf32, #tpu.memory_space<vmem>>, %arg10: memref<1x128xf32, #tpu.memory_space<vmem>>) attributes {dimension_semantics = [#tpu.dimension_semantics<parallel>], iteration_bounds = array<i64: 1>, scalar_prefetch = 0 : i64, scratch_operands = 0 : i64, tpu.core_type = #tpu.core_type<tc>, window_params = [{transform_indices = @transform_0, window_bounds = array<i64: 128, 8>}, {pipeline_mode = #tpu.pipeline_mode<synchronous>, transform_indices = @transform_1, window_bounds = array<i64: 8, 128>}, {pipeline_mode = #tpu.pipeline_mode<synchronous>, transform_indices = @transform_2, window_bounds = array<i64: 1, 128>}, {pipeline_mode = #tpu.pipeline_mode<synchronous>, transform_indices = @transform_3, window_bounds = array<i64: 128, 128>}, {pipeline_mode = #tpu.pipeline_mode<synchronous>, transform_indices = @transform_4, window_bounds = array<i64: 1, 128>}, {pipeline_mode = #tpu.pipeline_mode<synchronous>, transform_indices = @transform_5, window_bounds = array<i64: 128, 128>}, {pipeline_mode = #tpu.pipeline_mode<synchronous>, transform_indices = @transform_6, window_bounds = array<i64: 1, 128>}, {pipeline_mode = #tpu.pipeline_mode<synchronous>, transform_indices = @transform_7, window_bounds = array<i64: 1, 128>}, {pipeline_mode = #tpu.pipeline_mode<synchronous>, transform_indices = @transform_8, window_bounds = array<i64: 1, 1>}, {transform_indices = @transform_9, window_bounds = array<i64: 1, 128>}]} {
    %c0 = arith.constant 0 : index
    %c0_0 = arith.constant 0 : index
    %0 = vector.load %arg1[%c0, %c0_0] : memref<128x8xf32, #tpu.memory_space<vmem>>, vector<128x8xf32>
    %1 = arith.truncf %0 : vector<128x8xf32> to vector<128x8xbf16>
    %c0_1 = arith.constant 0 : index
    %c0_2 = arith.constant 0 : index
    %2 = vector.load %arg2[%c0_1, %c0_2] : memref<8x128xbf16, #tpu.memory_space<vmem>>, vector<8x128xbf16>
    %cst = arith.constant dense<0.000000e+00> : vector<128x128xf32>
    %3 = tpu.matmul %1, %2, %cst {dimension_numbers = #tpu.dot_dimension_numbers<[1], [0], [0], [1], [0, 0, 1, 1], [], []>} : vector<128x8xbf16>, vector<8x128xbf16>, vector<128x128xf32> -> vector<128x128xf32>
    %c0_3 = arith.constant 0 : index
    %c0_4 = arith.constant 0 : index
    %4 = vector.load %arg3[%c0_3, %c0_4] : memref<1x128xf32, #tpu.memory_space<vmem>>, vector<1x128xf32>
    %5 = vector.broadcast %4 : vector<1x128xf32> to vector<128x128xf32>
    %6 = arith.addf %3, %5 : vector<128x128xf32>
    %cst_5 = arith.constant 0.000000e+00 : f32
    %7 = vector.broadcast %cst_5 : f32 to vector<128x128xf32>
    %8 = arith.maximumf %6, %7 : vector<128x128xf32>
    %9 = arith.truncf %8 : vector<128x128xf32> to vector<128x128xbf16>
    %c0_6 = arith.constant 0 : index
    %c0_7 = arith.constant 0 : index
    %10 = vector.load %arg4[%c0_6, %c0_7] : memref<128x128xbf16, #tpu.memory_space<vmem>>, vector<128x128xbf16>
    %cst_8 = arith.constant dense<0.000000e+00> : vector<128x128xf32>
    %11 = tpu.matmul %9, %10, %cst_8 {dimension_numbers = #tpu.dot_dimension_numbers<[1], [0], [0], [1], [0, 0, 1, 1], [], []>} : vector<128x128xbf16>, vector<128x128xbf16>, vector<128x128xf32> -> vector<128x128xf32>
    %c0_9 = arith.constant 0 : index
    %c0_10 = arith.constant 0 : index
    %12 = vector.load %arg5[%c0_9, %c0_10] : memref<1x128xf32, #tpu.memory_space<vmem>>, vector<1x128xf32>
    %13 = vector.broadcast %12 : vector<1x128xf32> to vector<128x128xf32>
    %14 = arith.addf %11, %13 : vector<128x128xf32>
    %cst_11 = arith.constant 0.000000e+00 : f32
    %15 = vector.broadcast %cst_11 : f32 to vector<128x128xf32>
    %16 = arith.maximumf %14, %15 : vector<128x128xf32>
    %17 = arith.truncf %16 : vector<128x128xf32> to vector<128x128xbf16>
    %c0_12 = arith.constant 0 : index
    %c0_13 = arith.constant 0 : index
    %18 = vector.load %arg6[%c0_12, %c0_13] : memref<128x128xbf16, #tpu.memory_space<vmem>>, vector<128x128xbf16>
    %cst_14 = arith.constant dense<0.000000e+00> : vector<128x128xf32>
    %19 = tpu.matmul %17, %18, %cst_14 {dimension_numbers = #tpu.dot_dimension_numbers<[1], [0], [0], [1], [0, 0, 1, 1], [], []>} : vector<128x128xbf16>, vector<128x128xbf16>, vector<128x128xf32> -> vector<128x128xf32>
    %c0_15 = arith.constant 0 : index
    %c0_16 = arith.constant 0 : index
    %20 = vector.load %arg7[%c0_15, %c0_16] : memref<1x128xf32, #tpu.memory_space<vmem>>, vector<1x128xf32>
    %21 = vector.broadcast %20 : vector<1x128xf32> to vector<128x128xf32>
    %22 = arith.addf %19, %21 : vector<128x128xf32>
    %cst_17 = arith.constant 0.000000e+00 : f32
    %23 = vector.broadcast %cst_17 : f32 to vector<128x128xf32>
    %24 = arith.maximumf %22, %23 : vector<128x128xf32>
    %c0_18 = arith.constant 0 : index
    %c0_19 = arith.constant 0 : index
    %25 = vector.load %arg8[%c0_18, %c0_19] : memref<1x128xbf16, #tpu.memory_space<vmem>>, vector<1x128xbf16>
    %26 = arith.truncf %24 : vector<128x128xf32> to vector<128x128xbf16>
    %cst_20 = arith.constant dense<0.000000e+00> : vector<1x128xf32>
    %27 = tpu.matmul %25, %26, %cst_20 {dimension_numbers = #tpu.dot_dimension_numbers<[1], [1], [0], [0], [0, 0, 1, 0], [], []>} : vector<1x128xbf16>, vector<128x128xbf16>, vector<1x128xf32> -> vector<1x128xf32>
    %c0_21 = arith.constant 0 : index
    %c0_22 = arith.constant 0 : index
    %28 = vector.load %arg9[%c0_21, %c0_22] : memref<1x1xf32, #tpu.memory_space<vmem>>, vector<1x1xf32>
    %29 = vector.broadcast %28 : vector<1x1xf32> to vector<1x128xf32>
    %30 = arith.addf %27, %29 : vector<1x128xf32>
    %c0_23 = arith.constant 0 : index
    %c0_24 = arith.constant 0 : index
    %31 = vector.load %arg10[%c0_23, %c0_24] : memref<1x128xf32, #tpu.memory_space<vmem>>, vector<1x128xf32>
    tpu.vector_store %arg10[%c0_23, %c0_24], %30 {strides = array<i32>} : memref<1x128xf32, #tpu.memory_space<vmem>>, vector<1x128xf32>,
    return
  }
  func.func @transform_0(%arg0: i32) -> (i32, i32) {
    %c0_i32 = arith.constant 0 : i32
    %c0_i32_0 = arith.constant 0 : i32
    return %arg0, %c0_i32 : i32, i32
  }
  func.func @transform_1(%arg0: i32) -> (i32, i32) {
    %c0_i32 = arith.constant 0 : i32
    %c0_i32_0 = arith.constant 0 : i32
    %c0_i32_1 = arith.constant 0 : i32
    return %c0_i32, %c0_i32_0 : i32, i32
  }
  func.func @transform_2(%arg0: i32) -> (i32, i32) {
    %c0_i32 = arith.constant 0 : i32
    %c0_i32_0 = arith.constant 0 : i32
    %c0_i32_1 = arith.constant 0 : i32
    return %c0_i32, %c0_i32_0 : i32, i32
  }
  func.func @transform_3(%arg0: i32) -> (i32, i32) {
    %c0_i32 = arith.constant 0 : i32
    %c0_i32_0 = arith.constant 0 : i32
    %c0_i32_1 = arith.constant 0 : i32
    return %c0_i32, %c0_i32_0 : i32, i32
  }
  func.func @transform_4(%arg0: i32) -> (i32, i32) {
    %c0_i32 = arith.constant 0 : i32
    %c0_i32_0 = arith.constant 0 : i32
    %c0_i32_1 = arith.constant 0 : i32
    return %c0_i32, %c0_i32_0 : i32, i32
  }
  func.func @transform_5(%arg0: i32) -> (i32, i32) {
    %c0_i32 = arith.constant 0 : i32
    %c0_i32_0 = arith.constant 0 : i32
    %c0_i32_1 = arith.constant 0 : i32
    return %c0_i32, %c0_i32_0 : i32, i32
  }
  func.func @transform_6(%arg0: i32) -> (i32, i32) {
    %c0_i32 = arith.constant 0 : i32
    %c0_i32_0 = arith.constant 0 : i32
    %c0_i32_1 = arith.constant 0 : i32
    return %c0_i32, %c0_i32_0 : i32, i32
  }
  func.func @transform_7(%arg0: i32) -> (i32, i32) {
    %c0_i32 = arith.constant 0 : i32
    %c0_i32_0 = arith.constant 0 : i32
    %c0_i32_1 = arith.constant 0 : i32
    return %c0_i32, %c0_i32_0 : i32, i32
  }
  func.func @transform_8(%arg0: i32) -> (i32, i32) {
    %c0_i32 = arith.constant 0 : i32
    %c0_i32_0 = arith.constant 0 : i32
    %c0_i32_1 = arith.constant 0 : i32
    return %c0_i32, %c0_i32_0 : i32, i32
  }
  func.func @transform_9(%arg0: i32) -> (i32, i32) {
    %c0_i32 = arith.constant 0 : i32
    %c0_i32_0 = arith.constant 0 : i32
    return %c0_i32, %arg0 : i32, i32
  }
}

</mosaic_0001>

<llo_original>
// kernel: _nn_forward_pallas.1
$region0: #{_nn_forward_pallas.1}
  #allocation0 [shape = 'u32[]', space=smem, size = 0x4, offset = 0x4, fixed_abs, tag = 'smem constant byte address 0x4 - core index']
  #allocation1 [shape = 'u32[72,128]{1,0:T(1,128)}', space=vmem, size = 0x9000, scoped, tag = 'internal scratch']
  #allocation2 [shape = 'f32[1,1]{1,0:T(1,128)S(1)}', space=vmem, size = 0x200, scoped, tag = 'scoped memory for _nn_forward_pallas.1']
  %s0 = inlined_call_operand.vmem [shape: f32[128,8], index: 0, kind: input, shape index: {}]
  %s1 = inlined_call_operand.vmem [shape: bf16[8,128], index: 1, kind: input, shape index: {}]
  %s2 = inlined_call_operand.vmem [shape: f32[1,128], index: 2, kind: input, shape index: {}]
  %s3 = inlined_call_operand.vmem [shape: bf16[128,128], index: 3, kind: input, shape index: {}]
  %s4 = inlined_call_operand.vmem [shape: f32[1,128], index: 4, kind: input, shape index: {}]
  %s5 = inlined_call_operand.vmem [shape: bf16[128,128], index: 5, kind: input, shape index: {}]
  %s6 = inlined_call_operand.vmem [shape: f32[1,128], index: 6, kind: input, shape index: {}]
  %s7 = inlined_call_operand.vmem [shape: bf16[1,128], index: 7, kind: input, shape index: {}]
  %s8 = inlined_call_operand.<no memory space> [shape: f32[1,1], index: 8, kind: input, shape index: {}]
  %s9 = inlined_call_operand.vmem [shape: f32[1,128], index: 9, kind: output, shape index: {}]
  %s10 = sld [smem:[#allocation0]]
  $region46: #{_nn_forward_pallas.1} parent=0
    _
  %s12 = ssub.s32 1, %s10
  %s13 = scalar_select 0, %s12, %s10
  %v14 = vstv %s8
  %15 = vst [vmem:[#allocation2] sm:$0x1] %v14
  // Predicated region
  $region2: #{_nn_forward_pallas.1} parent=0 // pred_check
    _
  $region3: #{_nn_forward_pallas.1} parent=0 // pred_check_branch
    %17 = sbr.rel (0) target = $region5
  $region4: #{_nn_forward_pallas.1} parent=0 // pred_region
    _
  $region5: #{_nn_forward_pallas.1} parent=0 // pred_fallthru
    _
  // Predicated region
  $region6: #{_nn_forward_pallas.1} parent=0 // pred_check
    _
  $region7: #{_nn_forward_pallas.1} parent=0 // pred_check_branch
    %19 = sbr.rel (0) target = $region9
  $region8: #{_nn_forward_pallas.1} parent=0 // pred_region
    _
  $region9: #{_nn_forward_pallas.1} parent=0 // pred_fallthru
    _
  // Predicated region
  $region10: #{_nn_forward_pallas.1} parent=0 // pred_check
    _
  $region11: #{_nn_forward_pallas.1} parent=0 // pred_check_branch
    %21 = sbr.rel (0) target = $region13
  $region12: #{_nn_forward_pallas.1} parent=0 // pred_region
    _
  $region13: #{_nn_forward_pallas.1} parent=0 // pred_fallthru
    _
  // Predicated region
  $region14: #{_nn_forward_pallas.1} parent=0 // pred_check
    _
  $region15: #{_nn_forward_pallas.1} parent=0 // pred_check_branch
    %23 = sbr.rel (0) target = $region17
  $region16: #{_nn_forward_pallas.1} parent=0 // pred_region
    _
  $region17: #{_nn_forward_pallas.1} parent=0 // pred_fallthru
    _
  // Predicated region
  $region18: #{_nn_forward_pallas.1} parent=0 // pred_check
    _
  $region19: #{_nn_forward_pallas.1} parent=0 // pred_check_branch
    %25 = sbr.rel (0) target = $region21
  $region20: #{_nn_forward_pallas.1} parent=0 // pred_region
    _
  $region21: #{_nn_forward_pallas.1} parent=0 // pred_fallthru
    _
  // Predicated region
  $region22: #{_nn_forward_pallas.1} parent=0 // pred_check
    _
  $region23: #{_nn_forward_pallas.1} parent=0 // pred_check_branch
    %27 = sbr.rel (0) target = $region25
  $region24: #{_nn_forward_pallas.1} parent=0 // pred_region
    _
  $region25: #{_nn_forward_pallas.1} parent=0 // pred_fallthru
    _
  // Predicated region
  $region26: #{_nn_forward_pallas.1} parent=0 // pred_check
    _
  $region27: #{_nn_forward_pallas.1} parent=0 // pred_check_branch
    %29 = sbr.rel (0) target = $region29
  $region28: #{_nn_forward_pallas.1} parent=0 // pred_region
    _
  $region29: #{_nn_forward_pallas.1} parent=0 // pred_fallthru
    _
  // Predicated region
  $region30: #{_nn_forward_pallas.1} parent=0 // pred_check
    _
  $region31: #{_nn_forward_pallas.1} parent=0 // pred_check_branch
    %31 = sbr.rel (0) target = $region33
  $region32: #{_nn_forward_pallas.1} parent=0 // pred_region
    _
  $region33: #{_nn_forward_pallas.1} parent=0 // pred_fallthru
    _
  // Predicated region
  $region34: #{_nn_forward_pallas.1} parent=0 // pred_check
    _
  $region35: #{_nn_forward_pallas.1} parent=0 // pred_check_branch
    %33 = sbr.rel (0) target = $region37
  $region36: #{_nn_forward_pallas.1} parent=0 // pred_region
    _
  $region37: #{_nn_forward_pallas.1} parent=0 // pred_fallthru
    _
  %v35 = vld [vmem:[%s0] sm:$0xff]
  %v36 = vld [vmem:[%s0 + $0x8] sm:$0xff]
  %v37 = vld [vmem:[%s0 + $0x10] sm:$0xff]
  %v38 = vld [vmem:[%s0 + $0x18] sm:$0xff]
  %v39 = vld [vmem:[%s0 + $0x20] sm:$0xff]
  %v40 = vld [vmem:[%s0 + $0x28] sm:$0xff]
  %v41 = vld [vmem:[%s0 + $0x30] sm:$0xff]
  %v42 = vld [vmem:[%s0 + $0x38] sm:$0xff]
  %v43 = vld [vmem:[%s0 + $0x40] sm:$0xff]
  %v44 = vld [vmem:[%s0 + $0x48] sm:$0xff]
  %v45 = vld [vmem:[%s0 + $0x50] sm:$0xff]
  %v46 = vld [vmem:[%s0 + $0x58] sm:$0xff]
  %v47 = vld [vmem:[%s0 + $0x60] sm:$0xff]
  %v48 = vld [vmem:[%s0 + $0x68] sm:$0xff]
  %v49 = vld [vmem:[%s0 + $0x70] sm:$0xff]
  %v50 = vld [vmem:[%s0 + $0x78] sm:$0xff]
  %v51 = vpack.c.bf16 %v36, %v35
  %v52 = vpack.c.bf16 %v38, %v37
  %v53 = vpack.c.bf16 %v40, %v39
  %v54 = vpack.c.bf16 %v42, %v41
  %v55 = vpack.c.bf16 %v44, %v43
  %v56 = vpack.c.bf16 %v46, %v45
  %v57 = vpack.c.bf16 %v48, %v47
  %v58 = vpack.c.bf16 %v50, %v49
  %v59 = vld [vmem:[%s1] sm:$0xf]
  %v60 = vld [vmem:[%s2] sm:$0x1]
  %v62 = vperm.slane %v60, 0
  %vm64 = vcmask 64512
  %v66 = vsel %vm64, %v51, 0
  %v69 = vsel %vm64, %v52, 0
  %v72 = vsel %vm64, %v53, 0
  %v75 = vsel %vm64, %v54, 0
  %v78 = vsel %vm64, %v55, 0
  %v81 = vsel %vm64, %v56, 0
  %v84 = vsel %vm64, %v57, 0
  %v87 = vsel %vm64, %v58, 0
  %vm89 = vcmask 1043456
  %v91 = vsel %vm89, %v59, 0
  %93 = vmatpush.bf16.msra.mxu0 0
  %94 = vmatpush.bf16.msra.mxu0 0
  %95 = vmatpush.bf16.msra.mxu0 0
  %96 = vmatpush.bf16.msra.mxu0 0
  %97 = vmatpush.bf16.msra.mxu0 0
  %98 = vmatpush.bf16.msra.mxu0 0
  %99 = vmatpush.bf16.msra.mxu0 0
  %100 = vmatpush.bf16.msra.mxu0 %v91
  %101 = vmatmul.bf16.gmra.mxu0 %v66
  %v102 = vpop.f32.mrf.mxu0
  %v103 = vadd.f32 %v62, %v102
  %v104 = vpop.f32.mrf.mxu0
  %v105 = vadd.f32 %v62, %v104
  %106 = vmatmul.bf16.gmra.mxu0 %v69
  %v107 = vpop.f32.mrf.mxu0
  %v108 = vadd.f32 %v62, %v107
  %v109 = vpop.f32.mrf.mxu0
  %v110 = vadd.f32 %v62, %v109
  %111 = vmatmul.bf16.gmra.mxu0 %v72
  %v112 = vpop.f32.mrf.mxu0
  %v113 = vadd.f32 %v62, %v112
  %v114 = vpop.f32.mrf.mxu0
  %v115 = vadd.f32 %v62, %v114
  %116 = vmatmul.bf16.gmra.mxu0 %v75
  %v117 = vpop.f32.mrf.mxu0
  %v118 = vadd.f32 %v62, %v117
  %v119 = vpop.f32.mrf.mxu0
  %v120 = vadd.f32 %v62, %v119
  %121 = vmatmul.bf16.gmra.mxu0 %v78
  %v122 = vpop.f32.mrf.mxu0
  %v123 = vadd.f32 %v62, %v122
  %v124 = vpop.f32.mrf.mxu0
  %v125 = vadd.f32 %v62, %v124
  %126 = vmatmul.bf16.gmra.mxu0 %v81
  %v127 = vpop.f32.mrf.mxu0
  %v128 = vadd.f32 %v62, %v127
  %v129 = vpop.f32.mrf.mxu0
  %v130 = vadd.f32 %v62, %v129
  %131 = vmatmul.bf16.gmra.mxu0 %v84
  %v132 = vpop.f32.mrf.mxu0
  %v133 = vadd.f32 %v62, %v132
  %v134 = vpop.f32.mrf.mxu0
  %v135 = vadd.f32 %v62, %v134
  %136 = vmatmul.bf16.gmra.mxu0 %v87
  %v137 = vpop.f32.mrf.mxu0
  %v138 = vadd.f32 %v62, %v137
  %v139 = vpop.f32.mrf.mxu0
  %v140 = vadd.f32 %v62, %v139
  %141 = vdwg.mxu0
  %v142 = vmax.f32 %v103, 0.0
  %v143 = vmax.f32 %v105, 0.0
  %v144 = vmax.f32 %v108, 0.0
  %v145 = vmax.f32 %v110, 0.0
  %v146 = vmax.f32 %v113, 0.0
  %v147 = vmax.f32 %v115, 0.0
  %v148 = vmax.f32 %v118, 0.0
  %v149 = vmax.f32 %v120, 0.0
  %v150 = vmax.f32 %v123, 0.0
  %v151 = vmax.f32 %v125, 0.0
  %v152 = vmax.f32 %v128, 0.0
  %v153 = vmax.f32 %v130, 0.0
  %v154 = vmax.f32 %v133, 0.0
  %v155 = vmax.f32 %v135, 0.0
  %v156 = vmax.f32 %v138, 0.0
  %v157 = vmax.f32 %v140, 0.0
  %v158 = vpack.c.bf16 %v143, %v142
  %v159 = vpack.c.bf16 %v145, %v144
  %v160 = vpack.c.bf16 %v147, %v146
  %v161 = vpack.c.bf16 %v149, %v148
  %v162 = vpack.c.bf16 %v151, %v150
  %v163 = vpack.c.bf16 %v153, %v152
  %v164 = vpack.c.bf16 %v155, %v154
  %v165 = vpack.c.bf16 %v157, %v156
  %v166 = vld [vmem:[%s3] sm:$0xf]
  %v167 = vld [vmem:[%s3 + $0x4] sm:$0xf]
  %v168 = vld [vmem:[%s3 + $0x8] sm:$0xf]
  %v169 = vld [vmem:[%s3 + $0xc] sm:$0xf]
  %v170 = vld [vmem:[%s3 + $0x10] sm:$0xf]
  %v171 = vld [vmem:[%s3 + $0x14] sm:$0xf]
  %v172 = vld [vmem:[%s3 + $0x18] sm:$0xf]
  %v173 = vld [vmem:[%s3 + $0x1c] sm:$0xf]
  %v174 = vld [vmem:[%s3 + $0x20] sm:$0xf]
  %v175 = vld [vmem:[%s3 + $0x24] sm:$0xf]
  %v176 = vld [vmem:[%s3 + $0x28] sm:$0xf]
  %v177 = vld [vmem:[%s3 + $0x2c] sm:$0xf]
  %v178 = vld [vmem:[%s3 + $0x30] sm:$0xf]
  %v179 = vld [vmem:[%s3 + $0x34] sm:$0xf]
  %v180 = vld [vmem:[%s3 + $0x38] sm:$0xf]
  %v181 = vld [vmem:[%s3 + $0x3c] sm:$0xf]
  %v182 = vld [vmem:[%s4] sm:$0x1]
  %v184 = vperm.slane %v182, 0
  %v202 = vunpack.c.l.b16 %v166
  %v203 = vunpack.c.l.b16 %v167
  %v204 = vunpack.c.l.b16 %v168
  %v205 = vunpack.c.l.b16 %v169
  %v206 = vunpack.c.l.b16 %v170
  %v207 = vunpack.c.l.b16 %v171
  %v208 = vunpack.c.l.b16 %v172
  %v209 = vunpack.c.l.b16 %v173
  %v210 = vunpack.c.l.b16 %v174
  %v211 = vunpack.c.l.b16 %v175
  %v212 = vunpack.c.l.b16 %v176
  %v213 = vunpack.c.l.b16 %v177
  %v214 = vunpack.c.l.b16 %v178
  %v215 = vunpack.c.l.b16 %v179
  %v216 = vunpack.c.l.b16 %v180
  %v217 = vunpack.c.l.b16 %v181
  %v218 = vpack.c.b16 %v203, %v202
  %v219 = vpack.c.b16 %v205, %v204
  %v220 = vpack.c.b16 %v207, %v206
  %v221 = vpack.c.b16 %v209, %v208
  %v222 = vpack.c.b16 %v211, %v210
  %v223 = vpack.c.b16 %v213, %v212
  %v224 = vpack.c.b16 %v215, %v214
  %v225 = vpack.c.b16 %v217, %v216
  %234 = vmatpush.bf16.msra.mxu0 %v225
  %235 = vmatpush.bf16.msra.mxu0 %v224
  %236 = vmatpush.bf16.msra.mxu0 %v223
  %237 = vmatpush.bf16.msra.mxu0 %v222
  %238 = vmatpush.bf16.msra.mxu0 %v221
  %239 = vmatpush.bf16.msra.mxu0 %v220
  %240 = vmatpush.bf16.msra.mxu0 %v219
  %241 = vmatpush.bf16.msra.mxu0 %v218
  %242 = vmatmul.bf16.gmra.mxu0 %v158
  %v243 = vpop.f32.mrf.mxu0
  %v244 = vadd.f32 %v184, %v243
  %v245 = vpop.f32.mrf.mxu0
  %v246 = vadd.f32 %v184, %v245
  %247 = vmatmul.bf16.gmra.mxu0 %v159
  %v248 = vpop.f32.mrf.mxu0
  %v249 = vadd.f32 %v184, %v248
  %v250 = vpop.f32.mrf.mxu0
  %v251 = vadd.f32 %v184, %v250
  %252 = vmatmul.bf16.gmra.mxu0 %v160
  %v253 = vpop.f32.mrf.mxu0
  %v254 = vadd.f32 %v184, %v253
  %v255 = vpop.f32.mrf.mxu0
  %v256 = vadd.f32 %v184, %v255
  %257 = vmatmul.bf16.gmra.mxu0 %v161
  %v258 = vpop.f32.mrf.mxu0
  %v259 = vadd.f32 %v184, %v258
  %v260 = vpop.f32.mrf.mxu0
  %v261 = vadd.f32 %v184, %v260
  %262 = vmatmul.bf16.gmra.mxu0 %v162
  %v263 = vpop.f32.mrf.mxu0
  %v264 = vadd.f32 %v184, %v263
  %v265 = vpop.f32.mrf.mxu0
  %v266 = vadd.f32 %v184, %v265
  %267 = vmatmul.bf16.gmra.mxu0 %v163
  %v268 = vpop.f32.mrf.mxu0
  %v269 = vadd.f32 %v184, %v268
  %v270 = vpop.f32.mrf.mxu0
  %v271 = vadd.f32 %v184, %v270
  %272 = vmatmul.bf16.gmra.mxu0 %v164
  %v273 = vpop.f32.mrf.mxu0
  %v274 = vadd.f32 %v184, %v273
  %v275 = vpop.f32.mrf.mxu0
  %v276 = vadd.f32 %v184, %v275
  %277 = vmatmul.bf16.gmra.mxu0 %v165
  %v278 = vpop.f32.mrf.mxu0
  %v279 = vadd.f32 %v184, %v278
  %v280 = vpop.f32.mrf.mxu0
  %v281 = vadd.f32 %v184, %v280
  %282 = vdwg.mxu0
  %v283 = vmax.f32 %v244, 0.0
  %v284 = vmax.f32 %v246, 0.0
  %v285 = vmax.f32 %v249, 0.0
  %v286 = vmax.f32 %v251, 0.0
  %v287 = vmax.f32 %v254, 0.0
  %v288 = vmax.f32 %v256, 0.0
  %v289 = vmax.f32 %v259, 0.0
  %v290 = vmax.f32 %v261, 0.0
  %v291 = vmax.f32 %v264, 0.0
  %v292 = vmax.f32 %v266, 0.0
  %v293 = vmax.f32 %v269, 0.0
  %v294 = vmax.f32 %v271, 0.0
  %v295 = vmax.f32 %v274, 0.0
  %v296 = vmax.f32 %v276, 0.0
  %v297 = vmax.f32 %v279, 0.0
  %v298 = vmax.f32 %v281, 0.0
  %v299 = vpack.c.bf16 %v284, %v283
  %v300 = vpack.c.bf16 %v286, %v285
  %v301 = vpack.c.bf16 %v288, %v287
  %v302 = vpack.c.bf16 %v290, %v289
  %v303 = vpack.c.bf16 %v292, %v291
  %v304 = vpack.c.bf16 %v294, %v293
  %v305 = vpack.c.bf16 %v296, %v295
  %v306 = vpack.c.bf16 %v298, %v297
  %v307 = vld [vmem:[%s5] sm:$0xf]
  %v308 = vld [vmem:[%s5 + $0x4] sm:$0xf]
  %v309 = vld [vmem:[%s5 + $0x8] sm:$0xf]
  %v310 = vld [vmem:[%s5 + $0xc] sm:$0xf]
  %v311 = vld [vmem:[%s5 + $0x10] sm:$0xf]
  %v312 = vld [vmem:[%s5 + $0x14] sm:$0xf]
  %v313 = vld [vmem:[%s5 + $0x18] sm:$0xf]
  %v314 = vld [vmem:[%s5 + $0x1c] sm:$0xf]
  %v315 = vld [vmem:[%s5 + $0x20] sm:$0xf]
  %v316 = vld [vmem:[%s5 + $0x24] sm:$0xf]
  %v317 = vld [vmem:[%s5 + $0x28] sm:$0xf]
  %v318 = vld [vmem:[%s5 + $0x2c] sm:$0xf]
  %v319 = vld [vmem:[%s5 + $0x30] sm:$0xf]
  %v320 = vld [vmem:[%s5 + $0x34] sm:$0xf]
  %v321 = vld [vmem:[%s5 + $0x38] sm:$0xf]
  %v322 = vld [vmem:[%s5 + $0x3c] sm:$0xf]
  %v323 = vld [vmem:[%s6] sm:$0x1]
  %v325 = vperm.slane %v323, 0
  %v343 = vunpack.c.l.b16 %v307
  %v344 = vunpack.c.l.b16 %v308
  %v345 = vunpack.c.l.b16 %v309
  %v346 = vunpack.c.l.b16 %v310
  %v347 = vunpack.c.l.b16 %v311
  %v348 = vunpack.c.l.b16 %v312
  %v349 = vunpack.c.l.b16 %v313
  %v350 = vunpack.c.l.b16 %v314
  %v351 = vunpack.c.l.b16 %v315
  %v352 = vunpack.c.l.b16 %v316
  %v353 = vunpack.c.l.b16 %v317
  %v354 = vunpack.c.l.b16 %v318
  %v355 = vunpack.c.l.b16 %v319
  %v356 = vunpack.c.l.b16 %v320
  %v357 = vunpack.c.l.b16 %v321
  %v358 = vunpack.c.l.b16 %v322
  %v359 = vpack.c.b16 %v344, %v343
  %v360 = vpack.c.b16 %v346, %v345
  %v361 = vpack.c.b16 %v348, %v347
  %v362 = vpack.c.b16 %v350, %v349
  %v363 = vpack.c.b16 %v352, %v351
  %v364 = vpack.c.b16 %v354, %v353
  %v365 = vpack.c.b16 %v356, %v355
  %v366 = vpack.c.b16 %v358, %v357
  %375 = vmatpush.bf16.msra.mxu0 %v366
  %376 = vmatpush.bf16.msra.mxu0 %v365
  %377 = vmatpush.bf16.msra.mxu0 %v364
  %378 = vmatpush.bf16.msra.mxu0 %v363
  %379 = vmatpush.bf16.msra.mxu0 %v362
  %380 = vmatpush.bf16.msra.mxu0 %v361
  %381 = vmatpush.bf16.msra.mxu0 %v360
  %382 = vmatpush.bf16.msra.mxu0 %v359
  %383 = vmatmul.bf16.gmra.mxu0 %v299
  %v384 = vpop.f32.mrf.mxu0
  %v385 = vadd.f32 %v325, %v384
  %v386 = vpop.f32.mrf.mxu0
  %v387 = vadd.f32 %v325, %v386
  %388 = vmatmul.bf16.gmra.mxu0 %v300
  %v389 = vpop.f32.mrf.mxu0
  %v390 = vadd.f32 %v325, %v389
  %v391 = vpop.f32.mrf.mxu0
  %v392 = vadd.f32 %v325, %v391
  %393 = vmatmul.bf16.gmra.mxu0 %v301
  %v394 = vpop.f32.mrf.mxu0
  %v395 = vadd.f32 %v325, %v394
  %v396 = vpop.f32.mrf.mxu0
  %v397 = vadd.f32 %v325, %v396
  %398 = vmatmul.bf16.gmra.mxu0 %v302
  %v399 = vpop.f32.mrf.mxu0
  %v400 = vadd.f32 %v325, %v399
  %v401 = vpop.f32.mrf.mxu0
  %v402 = vadd.f32 %v325, %v401
  %403 = vmatmul.bf16.gmra.mxu0 %v303
  %v404 = vpop.f32.mrf.mxu0
  %v405 = vadd.f32 %v325, %v404
  %v406 = vpop.f32.mrf.mxu0
  %v407 = vadd.f32 %v325, %v406
  %408 = vmatmul.bf16.gmra.mxu0 %v304
  %v409 = vpop.f32.mrf.mxu0
  %v410 = vadd.f32 %v325, %v409
  %v411 = vpop.f32.mrf.mxu0
  %v412 = vadd.f32 %v325, %v411
  %413 = vmatmul.bf16.gmra.mxu0 %v305
  %v414 = vpop.f32.mrf.mxu0
  %v415 = vadd.f32 %v325, %v414
  %v416 = vpop.f32.mrf.mxu0
  %v417 = vadd.f32 %v325, %v416
  %418 = vmatmul.bf16.gmra.mxu0 %v306
  %v419 = vpop.f32.mrf.mxu0
  %v420 = vadd.f32 %v325, %v419
  %v421 = vpop.f32.mrf.mxu0
  %v422 = vadd.f32 %v325, %v421
  %423 = vdwg.mxu0
  %v424 = vmax.f32 %v385, 0.0
  %v425 = vmax.f32 %v387, 0.0
  %v426 = vmax.f32 %v390, 0.0
  %v427 = vmax.f32 %v392, 0.0
  %v428 = vmax.f32 %v395, 0.0
  %v429 = vmax.f32 %v397, 0.0
  %v430 = vmax.f32 %v400, 0.0
  %v431 = vmax.f32 %v402, 0.0
  %v432 = vmax.f32 %v405, 0.0
  %v433 = vmax.f32 %v407, 0.0
  %v434 = vmax.f32 %v410, 0.0
  %v435 = vmax.f32 %v412, 0.0
  %v436 = vmax.f32 %v415, 0.0
  %v437 = vmax.f32 %v417, 0.0
  %v438 = vmax.f32 %v420, 0.0
  %v439 = vmax.f32 %v422, 0.0
  %v440 = vld [vmem:[%s7] sm:$0x1]
  %v441 = vpack.c.bf16 %v425, %v424
  %v442 = vpack.c.bf16 %v427, %v426
  %v443 = vpack.c.bf16 %v429, %v428
  %v444 = vpack.c.bf16 %v431, %v430
  %v445 = vpack.c.bf16 %v433, %v432
  %v446 = vpack.c.bf16 %v435, %v434
  %v447 = vpack.c.bf16 %v437, %v436
  %v448 = vpack.c.bf16 %v439, %v438
  %v449 = vld [vmem:[#allocation2] sm:$0x1]
  %451 = vset.pattern.permute.xlu0 0
  %452 = vperm.xlu0 %451, %v449
  %v453 = vpop.permute.xlu0 %452
  %v455 = vperm.slane %v453, 0
  %456 = vmatpush.bf16.xpose.msra.mxu0 %v448
  %457 = vmatpush.bf16.xpose.msra.mxu0 %v447
  %458 = vmatpush.bf16.xpose.msra.mxu0 %v446
  %459 = vmatpush.bf16.xpose.msra.mxu0 %v445
  %460 = vmatpush.bf16.xpose.msra.mxu0 %v444
  %461 = vmatpush.bf16.xpose.msra.mxu0 %v443
  %462 = vmatpush.bf16.xpose.msra.mxu0 %v442
  %463 = vmatpush.bf16.xpose.msra.mxu0 %v441
  %464 = vmatmul.bf16.gmra.mxu0 %v440
  %v465 = vpop.f32.mrf.mxu0
  %v466 = vadd.f32 %v455, %v465
  %v467 = vpop.f32.mrf.mxu0
  %468 = vdwg.mxu0
  %469 = vst [vmem:[%s9] sm:$0x1] %v466
  // Predicated region
  $region38: #{_nn_forward_pallas.1} parent=0 // pred_check
    _
  $region39: #{_nn_forward_pallas.1} parent=0 // pred_check_branch
    %471 = sbr.rel (0) target = $region41
  $region40: #{_nn_forward_pallas.1} parent=0 // pred_region
    _
  $region41: #{_nn_forward_pallas.1} parent=0 // pred_fallthru
    _
  // Predicated region
  $region42: #{_nn_forward_pallas.1} parent=0 // pred_check
    _
  $region43: #{_nn_forward_pallas.1} parent=0 // pred_check_branch
    %473 = sbr.rel (0) target = $region45
  $region44: #{_nn_forward_pallas.1} parent=0 // pred_region
    _
  $region45: #{_nn_forward_pallas.1} parent=0 // pred_fallthru
    _

</llo_original>
